<compile_context>
chip_gen: v6e
topology: v6e:2x2x1
jax: 0.10.0
libtpu: 0.0.40
codegen_flags: <defaults>
</compile_context>

<pallas_src>
import functools
import math

import jax
import jax.numpy as jnp
from jax.experimental import pallas as pl
from jax.experimental.pallas import tpu as pltpu

_LANE = 128


def _round_up(x, m):
    return ((x + m - 1) // m) * m


def _pad2(a, rows, cols, dtype):
    """Zero-pad a 2-D array to (rows, cols) and cast to dtype."""
    out = jnp.zeros((rows, cols), dtype)
    return out.at[: a.shape[0], : a.shape[1]].set(a.astype(dtype))


# ---------------------------------------------------------------------------
# Fused kernel: whole MLP in one body, activations never leave VMEM/vregs.
# refs = (state, action, w_s, w_a, b0, [w_i, b_i]..., out)
# ---------------------------------------------------------------------------
def _phi_mlp_fused_kernel(*refs):
    state_ref, action_ref, w_s_ref, w_a_ref, b0_ref = refs[:5]
    layer_refs = refs[5:-1]
    out_ref = refs[-1]

    wdt = w_s_ref.dtype  # bf16

    # Layer 0: concat folded into a split-K matmul (f32 accumulation on MXU).
    y = (
        jnp.dot(state_ref[...].astype(wdt), w_s_ref[...],
                preferred_element_type=jnp.float32)
        + jnp.dot(action_ref[...].astype(wdt), w_a_ref[...],
                  preferred_element_type=jnp.float32)
        + b0_ref[...]
    )

    # Remaining layers: ReLU on the previous (hidden) output, then Linear.
    n_more = len(layer_refs) // 2
    for i in range(n_more):
        w_ref = layer_refs[2 * i]
        b_ref = layer_refs[2 * i + 1]
        y = jnp.maximum(y, 0.0)                              # ReLU (f32, VPU)
        y = jnp.dot(y.astype(w_ref.dtype), w_ref[...],
                    preferred_element_type=jnp.float32) + b_ref[...]

    # Single cast at the very end; padded lanes are exact zeros.
    out_ref[...] = y.astype(out_ref.dtype)


# ---------------------------------------------------------------------------
# Parameter init (PyTorch nn.Linear defaults) + packing for the kernel.
# ---------------------------------------------------------------------------
def init_phi_params(key, state_dim, action_dim, hidden_dim, feature_dim,
                    hidden_depth):
    """Unpadded f32 params, uniform(-1/sqrt(fan_in), 1/sqrt(fan_in)).
    Weights stored (in, out) so forward is x @ W + b."""
    in_dim = state_dim + action_dim
    if hidden_depth == 0:
        dims = [(in_dim, feature_dim)]
    else:
        dims = [(in_dim, hidden_dim)]
        dims += [(hidden_dim, hidden_dim)] * (hidden_depth - 1)
        dims += [(hidden_dim, feature_dim)]

    params = []
    for (din, dout) in dims:
        key, kw, kb = jax.random.split(key, 3)
        bound = 1.0 / math.sqrt(din)
        w = jax.random.uniform(kw, (din, dout), jnp.float32, -bound, bound)
        b = jax.random.uniform(kb, (dout,), jnp.float32, -bound, bound)
        params.append((w, b))
    return params


def pack_phi_params(raw_params, state_dim, action_dim, *,
                    weight_dtype=jnp.bfloat16):
    """Split layer-0 weight along K (state/action rows), zero-pad all output
    widths (and hidden K dims) up to 128 lanes, cast weights to bf16, keep
    biases in f32 (row vectors for broadcast inside the kernel)."""
    packed = []

    w0, b0 = raw_params[0]
    out0_pad = _round_up(w0.shape[1], _LANE)
    packed.append(_pad2(w0[:state_dim], state_dim, out0_pad, weight_dtype))   # w_s
    packed.append(_pad2(w0[state_dim:], action_dim, out0_pad, weight_dtype))  # w_a
    packed.append(_pad2(b0.reshape(1, -1), 1, out0_pad, jnp.float32))         # b0

    prev_pad = out0_pad
    for (w, b) in raw_params[1:]:
        dout_pad = _round_up(w.shape[1], _LANE)
        packed.append(_pad2(w, prev_pad, dout_pad, weight_dtype))
        packed.append(_pad2(b.reshape(1, -1), 1, dout_pad, jnp.float32))
        prev_pad = dout_pad
    return packed


# ---------------------------------------------------------------------------
# Forward wrapper: one fused pallas_call, 1-D grid over batch.
# ---------------------------------------------------------------------------
@functools.partial(jax.jit, static_argnames=("feature_dim", "block_batch"))
def phi_forward(current_state, current_action, packed_params, feature_dim,
                block_batch=256):
    B, S = current_state.shape
    _, A = current_action.shape
    out_pad = packed_params[-1].shape[-1]  # padded feature width (x128)

    # Batch tile: multiple of 8 sublanes, capped for VMEM friendliness.
    tm = min(block_batch, _round_up(B, 8))
    B_pad = _round_up(B, tm)
    if B_pad != B:
        state_p = jnp.zeros((B_pad, S), current_state.dtype).at[:B].set(current_state)
        action_p = jnp.zeros((B_pad, A), current_action.dtype).at[:B].set(current_action)
    else:
        state_p, action_p = current_state, current_action

    grid = (B_pad // tm,)

    # Batch-tiled activations; weights/biases pinned (constant block index) so
    # they are DMA'd once and stay VMEM-resident across all grid steps.
    def _pinned(shape):
        return pl.BlockSpec(shape, lambda i: (0, 0))

    in_specs = [
        pl.BlockSpec((tm, S), lambda i: (i, 0)),
        pl.BlockSpec((tm, A), lambda i: (i, 0)),
    ] + [_pinned(p.shape) for p in packed_params]

    out = pl.pallas_call(
        _phi_mlp_fused_kernel,
        out_shape=jax.ShapeDtypeStruct((B_pad, out_pad), jnp.float32),
        grid_spec=pltpu.PrefetchScalarGridSpec(
            num_scalar_prefetch=0,
            grid=grid,
            in_specs=in_specs,
            out_specs=pl.BlockSpec((tm, out_pad), lambda i: (i, 0)),
        ),
        compiler_params=pltpu.CompilerParams(
            dimension_semantics=("parallel",)),
    )(state_p, action_p, *packed_params)

    # Slice back to the valid rows / feature columns.
    return out[:B, :feature_dim]


if __name__ == "__main__":
    # Small shapes consistent with the module.
    batch = 8
    state_dim, action_dim = 12, 4
    hidden_dim, feature_dim, hidden_depth = 32, 16, 2

    key = jax.random.PRNGKey(0)
    k_s, k_a, k_p = jax.random.split(key, 3)

    current_state = jax.random.normal(k_s, (batch, state_dim), jnp.float32)
    current_action = jax.random.normal(k_a, (batch, action_dim), jnp.float32)

    raw_params = init_phi_params(k_p, state_dim, action_dim, hidden_dim,
                                 feature_dim, hidden_depth)
    packed_params = pack_phi_params(raw_params, state_dim, action_dim)

    z = phi_forward(current_state, current_action, packed_params, feature_dim)
    jax.block_until_ready(z)
    assert z.shape == (batch, feature_dim)

    # Pure-JAX reference mirroring the kernel's bf16-weight / f32-accumulate math.
    x_ref = jnp.concatenate([current_state, current_action], axis=-1)
    for i, (w, b) in enumerate(raw_params):
        xw = jnp.dot(x_ref.astype(jnp.bfloat16).astype(jnp.float32),
                     w.astype(jnp.bfloat16).astype(jnp.float32))
        x_ref = xw + b
        if i != len(raw_params) - 1:
            x_ref = jnp.maximum(x_ref, 0.0)
    assert jnp.allclose(z, x_ref, atol=1e-2, rtol=1e-2), (
        float(jnp.max(jnp.abs(z - x_ref))))

    print("KERNEL_OK")
</pallas_src>

<mosaic_0001>
module attributes {stable_mosaic.version = 11 : i64} {
  func.func @_phi_mlp_fused_kernel(%arg0: i32, %arg1: memref<8x12xf32, #tpu.memory_space<vmem>>, %arg2: memref<8x4xf32, #tpu.memory_space<vmem>>, %arg3: memref<12x128xbf16, #tpu.memory_space<vmem>>, %arg4: memref<4x128xbf16, #tpu.memory_space<vmem>>, %arg5: memref<1x128xf32, #tpu.memory_space<vmem>>, %arg6: memref<128x128xbf16, #tpu.memory_space<vmem>>, %arg7: memref<1x128xf32, #tpu.memory_space<vmem>>, %arg8: memref<128x128xbf16, #tpu.memory_space<vmem>>, %arg9: memref<1x128xf32, #tpu.memory_space<vmem>>, %arg10: memref<8x128xf32, #tpu.memory_space<vmem>>) attributes {dimension_semantics = [#tpu.dimension_semantics<parallel>], iteration_bounds = array<i64: 1>, scalar_prefetch = 0 : i64, scratch_operands = 0 : i64, tpu.core_type = #tpu.core_type<tc>, window_params = [{transform_indices = @transform_0, window_bounds = array<i64: 8, 12>}, {transform_indices = @transform_1, window_bounds = array<i64: 8, 4>}, {pipeline_mode = #tpu.pipeline_mode<synchronous>, transform_indices = @transform_2, window_bounds = array<i64: 12, 128>}, {pipeline_mode = #tpu.pipeline_mode<synchronous>, transform_indices = @transform_3, window_bounds = array<i64: 4, 128>}, {pipeline_mode = #tpu.pipeline_mode<synchronous>, transform_indices = @transform_4, window_bounds = array<i64: 1, 128>}, {pipeline_mode = #tpu.pipeline_mode<synchronous>, transform_indices = @transform_5, window_bounds = array<i64: 128, 128>}, {pipeline_mode = #tpu.pipeline_mode<synchronous>, transform_indices = @transform_6, window_bounds = array<i64: 1, 128>}, {pipeline_mode = #tpu.pipeline_mode<synchronous>, transform_indices = @transform_7, window_bounds = array<i64: 128, 128>}, {pipeline_mode = #tpu.pipeline_mode<synchronous>, transform_indices = @transform_8, window_bounds = array<i64: 1, 128>}, {transform_indices = @transform_9, window_bounds = array<i64: 8, 128>}]} {
    %c0 = arith.constant 0 : index
    %c0_0 = arith.constant 0 : index
    %0 = vector.load %arg1[%c0, %c0_0] : memref<8x12xf32, #tpu.memory_space<vmem>>, vector<8x12xf32>
    %1 = arith.truncf %0 : vector<8x12xf32> to vector<8x12xbf16>
    %c0_1 = arith.constant 0 : index
    %c0_2 = arith.constant 0 : index
    %2 = vector.load %arg3[%c0_1, %c0_2] : memref<12x128xbf16, #tpu.memory_space<vmem>>, vector<12x128xbf16>
    %cst = arith.constant dense<0.000000e+00> : vector<8x128xf32>
    %3 = tpu.matmul %1, %2, %cst {dimension_numbers = #tpu.dot_dimension_numbers<[1], [0], [0], [1], [0, 0, 1, 1], [], []>} : vector<8x12xbf16>, vector<12x128xbf16>, vector<8x128xf32> -> vector<8x128xf32>
    %c0_3 = arith.constant 0 : index
    %c0_4 = arith.constant 0 : index
    %4 = vector.load %arg2[%c0_3, %c0_4] : memref<8x4xf32, #tpu.memory_space<vmem>>, vector<8x4xf32>
    %5 = arith.truncf %4 : vector<8x4xf32> to vector<8x4xbf16>
    %c0_5 = arith.constant 0 : index
    %c0_6 = arith.constant 0 : index
    %6 = vector.load %arg4[%c0_5, %c0_6] : memref<4x128xbf16, #tpu.memory_space<vmem>>, vector<4x128xbf16>
    %cst_7 = arith.constant dense<0.000000e+00> : vector<8x128xf32>
    %7 = tpu.matmul %5, %6, %cst_7 {dimension_numbers = #tpu.dot_dimension_numbers<[1], [0], [0], [1], [0, 0, 1, 1], [], []>} : vector<8x4xbf16>, vector<4x128xbf16>, vector<8x128xf32> -> vector<8x128xf32>
    %8 = arith.addf %3, %7 : vector<8x128xf32>
    %c0_8 = arith.constant 0 : index
    %c0_9 = arith.constant 0 : index
    %9 = vector.load %arg5[%c0_8, %c0_9] : memref<1x128xf32, #tpu.memory_space<vmem>>, vector<1x128xf32>
    %10 = vector.broadcast %9 : vector<1x128xf32> to vector<8x128xf32>
    %11 = arith.addf %8, %10 : vector<8x128xf32>
    %cst_10 = arith.constant 0.000000e+00 : f32
    %12 = vector.broadcast %cst_10 : f32 to vector<8x128xf32>
    %13 = arith.maximumf %11, %12 : vector<8x128xf32>
    %14 = arith.truncf %13 : vector<8x128xf32> to vector<8x128xbf16>
    %c0_11 = arith.constant 0 : index
    %c0_12 = arith.constant 0 : index
    %15 = vector.load %arg6[%c0_11, %c0_12] : memref<128x128xbf16, #tpu.memory_space<vmem>>, vector<128x128xbf16>
    %cst_13 = arith.constant dense<0.000000e+00> : vector<8x128xf32>
    %16 = tpu.matmul %14, %15, %cst_13 {dimension_numbers = #tpu.dot_dimension_numbers<[1], [0], [0], [1], [0, 0, 1, 1], [], []>} : vector<8x128xbf16>, vector<128x128xbf16>, vector<8x128xf32> -> vector<8x128xf32>
    %c0_14 = arith.constant 0 : index
    %c0_15 = arith.constant 0 : index
    %17 = vector.load %arg7[%c0_14, %c0_15] : memref<1x128xf32, #tpu.memory_space<vmem>>, vector<1x128xf32>
    %18 = vector.broadcast %17 : vector<1x128xf32> to vector<8x128xf32>
    %19 = arith.addf %16, %18 : vector<8x128xf32>
    %cst_16 = arith.constant 0.000000e+00 : f32
    %20 = vector.broadcast %cst_16 : f32 to vector<8x128xf32>
    %21 = arith.maximumf %19, %20 : vector<8x128xf32>
    %22 = arith.truncf %21 : vector<8x128xf32> to vector<8x128xbf16>
    %c0_17 = arith.constant 0 : index
    %c0_18 = arith.constant 0 : index
    %23 = vector.load %arg8[%c0_17, %c0_18] : memref<128x128xbf16, #tpu.memory_space<vmem>>, vector<128x128xbf16>
    %cst_19 = arith.constant dense<0.000000e+00> : vector<8x128xf32>
    %24 = tpu.matmul %22, %23, %cst_19 {dimension_numbers = #tpu.dot_dimension_numbers<[1], [0], [0], [1], [0, 0, 1, 1], [], []>} : vector<8x128xbf16>, vector<128x128xbf16>, vector<8x128xf32> -> vector<8x128xf32>
    %c0_20 = arith.constant 0 : index
    %c0_21 = arith.constant 0 : index
    %25 = vector.load %arg9[%c0_20, %c0_21] : memref<1x128xf32, #tpu.memory_space<vmem>>, vector<1x128xf32>
    %26 = vector.broadcast %25 : vector<1x128xf32> to vector<8x128xf32>
    %27 = arith.addf %24, %26 : vector<8x128xf32>
    %c0_22 = arith.constant 0 : index
    %c0_23 = arith.constant 0 : index
    %28 = vector.load %arg10[%c0_22, %c0_23] : memref<8x128xf32, #tpu.memory_space<vmem>>, vector<8x128xf32>
    tpu.vector_store %arg10[%c0_22, %c0_23], %27 {strides = array<i32>} : memref<8x128xf32, #tpu.memory_space<vmem>>, vector<8x128xf32>,
    return
  }
  func.func @transform_0(%arg0: i32) -> (i32, i32) {
    %c0_i32 = arith.constant 0 : i32
    %c0_i32_0 = arith.constant 0 : i32
    return %arg0, %c0_i32 : i32, i32
  }
  func.func @transform_1(%arg0: i32) -> (i32, i32) {
    %c0_i32 = arith.constant 0 : i32
    %c0_i32_0 = arith.constant 0 : i32
    return %arg0, %c0_i32 : i32, i32
  }
  func.func @transform_2(%arg0: i32) -> (i32, i32) {
    %c0_i32 = arith.constant 0 : i32
    %c0_i32_0 = arith.constant 0 : i32
    %c0_i32_1 = arith.constant 0 : i32
    return %c0_i32, %c0_i32_0 : i32, i32
  }
  func.func @transform_3(%arg0: i32) -> (i32, i32) {
    %c0_i32 = arith.constant 0 : i32
    %c0_i32_0 = arith.constant 0 : i32
    %c0_i32_1 = arith.constant 0 : i32
    return %c0_i32, %c0_i32_0 : i32, i32
  }
  func.func @transform_4(%arg0: i32) -> (i32, i32) {
    %c0_i32 = arith.constant 0 : i32
    %c0_i32_0 = arith.constant 0 : i32
    %c0_i32_1 = arith.constant 0 : i32
    return %c0_i32, %c0_i32_0 : i32, i32
  }
  func.func @transform_5(%arg0: i32) -> (i32, i32) {
    %c0_i32 = arith.constant 0 : i32
    %c0_i32_0 = arith.constant 0 : i32
    %c0_i32_1 = arith.constant 0 : i32
    return %c0_i32, %c0_i32_0 : i32, i32
  }
  func.func @transform_6(%arg0: i32) -> (i32, i32) {
    %c0_i32 = arith.constant 0 : i32
    %c0_i32_0 = arith.constant 0 : i32
    %c0_i32_1 = arith.constant 0 : i32
    return %c0_i32, %c0_i32_0 : i32, i32
  }
  func.func @transform_7(%arg0: i32) -> (i32, i32) {
    %c0_i32 = arith.constant 0 : i32
    %c0_i32_0 = arith.constant 0 : i32
    %c0_i32_1 = arith.constant 0 : i32
    return %c0_i32, %c0_i32_0 : i32, i32
  }
  func.func @transform_8(%arg0: i32) -> (i32, i32) {
    %c0_i32 = arith.constant 0 : i32
    %c0_i32_0 = arith.constant 0 : i32
    %c0_i32_1 = arith.constant 0 : i32
    return %c0_i32, %c0_i32_0 : i32, i32
  }
  func.func @transform_9(%arg0: i32) -> (i32, i32) {
    %c0_i32 = arith.constant 0 : i32
    %c0_i32_0 = arith.constant 0 : i32
    return %arg0, %c0_i32 : i32, i32
  }
}

</mosaic_0001>

<llo_original>
// kernel: phi_forward.1
$region0: #{phi_forward.1}
  #allocation0 [shape = 'u32[]', space=smem, size = 0x4, offset = 0x4, fixed_abs, tag = 'smem constant byte address 0x4 - core index']
  #allocation1 [shape = 'u32[144,128]{1,0:T(1,128)}', space=vmem, size = 0x12000, scoped, tag = 'internal scratch']
  %s0 = inlined_call_operand.vmem [shape: f32[8,12], index: 0, kind: input, shape index: {}]
  %s1 = inlined_call_operand.vmem [shape: f32[8,4], index: 1, kind: input, shape index: {}]
  %s2 = inlined_call_operand.hbm [shape: bf16[12,128], index: 2, kind: input, shape index: {}]
  %s3 = inlined_call_operand.vmem [shape: bf16[4,128], index: 3, kind: input, shape index: {}]
  %s4 = inlined_call_operand.vmem [shape: f32[1,128], index: 4, kind: input, shape index: {}]
  %s5 = inlined_call_operand.hbm [shape: bf16[128,128], index: 5, kind: input, shape index: {}]
  %s6 = inlined_call_operand.vmem [shape: f32[1,128], index: 6, kind: input, shape index: {}]
  %s7 = inlined_call_operand.hbm [shape: bf16[128,128], index: 7, kind: input, shape index: {}]
  %s8 = inlined_call_operand.vmem [shape: f32[1,128], index: 8, kind: input, shape index: {}]
  %s9 = inlined_call_operand.hbm [shape: f32[8,128], index: 9, kind: output, shape index: {}]
  %s10 = sld [smem:[#allocation0]]
  $region58: #{phi_forward.1} parent=0
    _
  %s12 = ssub.s32 1, %s10
  %s13 = scalar_select 0, %s12, %s10
  $region1: #{phi_forward.1} parent=0
    #allocation2 [shape = 'u8[4096]{0}', space=vmem, size = 0x1000, scoped, tag = 'input window, operand 2, single buffered']
    #allocation3 [shape = 's32[1]{0}', space=sflag, size = 0x4, scoped, tag = 'scoped memory for phi_forward.1']
    #allocation4 [shape = 's32[1]{0}', space=sflag, size = 0x4, scoped, tag = 'scoped memory for phi_forward.1']
    #allocation5 [shape = 'u8[32768]{0}', space=vmem, size = 0x8000, scoped, tag = 'input window, operand 5, single buffered']
    #allocation6 [shape = 's32[1]{0}', space=sflag, size = 0x4, scoped, tag = 'scoped memory for phi_forward.1']
    #allocation7 [shape = 'u8[32768]{0}', space=vmem, size = 0x8000, scoped, tag = 'input window, operand 7, single buffered']
    #allocation8 [shape = 'u8[4096]{0}', space=vmem, size = 0x1000, scoped, tag = 'output window, operand 0, single buffered']
    %14 = vsyncpa [#allocation3], 0
    %15 = vsyncpa [#allocation6], 0
    %16 = vsyncpa [#allocation4], 0
    // Predicated region
    $region2: #{phi_forward.1} parent=1 // pred_check
      _
    $region3: #{phi_forward.1} parent=1 // pred_check_branch
      %18 = sbr.rel (0) target = $region5
    $region4: #{phi_forward.1} parent=1 // pred_region
      _
    $region5: #{phi_forward.1} parent=1 // pred_fallthru
      _
    // Predicated region
    $region6: #{phi_forward.1} parent=1 // pred_check
      _
    $region7: #{phi_forward.1} parent=1 // pred_check_branch
      %20 = sbr.rel (0) target = $region9
    $region8: #{phi_forward.1} parent=1 // pred_region
      _
    $region9: #{phi_forward.1} parent=1 // pred_fallthru
      _
    // Predicated region
    $region10: #{phi_forward.1} parent=1 // pred_check
      _
    $region11: #{phi_forward.1} parent=1 // pred_check_branch
      %22 = sbr.rel (0) target = $region13
    $region12: #{phi_forward.1} parent=1 // pred_region
      %s24 = ssub.s32 128, 128
      %25 = vsyncadd [#allocation3], %s24
      %s26 = sshll.u32 [#allocation2], 4
      %s27 = int_to_ptr.vmem [resolvable:$true] %s26
      %32 = dma.hbm_to_vmem [thread:$0]  %s2, 128, %s27, [#allocation3], 64, 64, 4
    $region13: #{phi_forward.1} parent=1 // pred_fallthru
      _
    // Predicated region
    $region14: #{phi_forward.1} parent=1 // pred_check
      _
    $region15: #{phi_forward.1} parent=1 // pred_check_branch
      %34 = sbr.rel (0) target = $region17
    $region16: #{phi_forward.1} parent=1 // pred_region
      _
    $region17: #{phi_forward.1} parent=1 // pred_fallthru
      _
    // Predicated region
    $region18: #{phi_forward.1} parent=1 // pred_check
      _
    $region19: #{phi_forward.1} parent=1 // pred_check_branch
      %36 = sbr.rel (0) target = $region21
    $region20: #{phi_forward.1} parent=1 // pred_region
      _
    $region21: #{phi_forward.1} parent=1 // pred_fallthru
      _
    // Predicated region
    $region22: #{phi_forward.1} parent=1 // pred_check
      _
    $region23: #{phi_forward.1} parent=1 // pred_check_branch
      %38 = sbr.rel (0) target = $region25
    $region24: #{phi_forward.1} parent=1 // pred_region
      %s40 = ssub.s32 1024, 1024
      %41 = vsyncadd [#allocation6], %s40
      %s42 = sshll.u32 [#allocation5], 4
      %s43 = int_to_ptr.vmem [resolvable:$true] %s42
      %48 = dma.hbm_to_vmem [thread:$0]  %s5, 1024, %s43, [#allocation6], 64, 64, 4
    $region25: #{phi_forward.1} parent=1 // pred_fallthru
      _
    // Predicated region
    $region26: #{phi_forward.1} parent=1 // pred_check
      _
    $region27: #{phi_forward.1} parent=1 // pred_check_branch
      %50 = sbr.rel (0) target = $region29
    $region28: #{phi_forward.1} parent=1 // pred_region
      _
    $region29: #{phi_forward.1} parent=1 // pred_fallthru
      _
    // Predicated region
    $region30: #{phi_forward.1} parent=1 // pred_check
      _
    $region31: #{phi_forward.1} parent=1 // pred_check_branch
      %52 = sbr.rel (0) target = $region33
    $region32: #{phi_forward.1} parent=1 // pred_region
      %s54 = ssub.s32 1024, 1024
      %55 = vsyncadd [#allocation6], %s54
      %s56 = sshll.u32 [#allocation7], 4
      %s57 = int_to_ptr.vmem [resolvable:$true] %s56
      %62 = dma.hbm_to_vmem [thread:$0]  %s7, 1024, %s57, [#allocation6], 64, 64, 4
    $region33: #{phi_forward.1} parent=1 // pred_fallthru
      _
    // Predicated region
    $region34: #{phi_forward.1} parent=1 // pred_check
      _
    $region35: #{phi_forward.1} parent=1 // pred_check_branch
      %64 = sbr.rel (0) target = $region37
    $region36: #{phi_forward.1} parent=1 // pred_region
      _
    $region37: #{phi_forward.1} parent=1 // pred_fallthru
      _
    // Predicated region
    $region38: #{phi_forward.1} parent=1 // pred_check
      _
    $region39: #{phi_forward.1} parent=1 // pred_check_branch
      %66 = sbr.rel (0) target = $region41
    $region40: #{phi_forward.1} parent=1 // pred_region
      %67 = dma.done [#allocation3], 128
    $region41: #{phi_forward.1} parent=1 // pred_fallthru
      _
    // Predicated region
    $region42: #{phi_forward.1} parent=1 // pred_check
      _
    $region43: #{phi_forward.1} parent=1 // pred_check_branch
      %69 = sbr.rel (0) target = $region45
    $region44: #{phi_forward.1} parent=1 // pred_region
      %70 = dma.done [#allocation6], 1024
    $region45: #{phi_forward.1} parent=1 // pred_fallthru
      _
    // Predicated region
    $region46: #{phi_forward.1} parent=1 // pred_check
      _
    $region47: #{phi_forward.1} parent=1 // pred_check_branch
      %72 = sbr.rel (0) target = $region49
    $region48: #{phi_forward.1} parent=1 // pred_region
      %73 = dma.done [#allocation6], 1024
    $region49: #{phi_forward.1} parent=1 // pred_fallthru
      _
    %v75 = vld [vmem:[%s0] sm:$0xff]
    %v76 = vpack.c.bf16 %v75, %v75
    %v77 = vld [vmem:[#allocation2] sm:$0xf]
    %v78 = vld [vmem:[#allocation2 + $0x4] sm:$0x3]
    %v79 = vld [vmem:[%s1] sm:$0xff]
    %v80 = vpack.c.bf16 %v79, %v79
    %v81 = vld [vmem:[%s3] sm:$0x3]
    %vm82 = vcmask 31744
    %v84 = vsel %vm82, %v80, 0
    %vm86 = vcmask 1041408
    %v88 = vsel %vm86, %v81, 0
    %90 = vmatprep.subr.bf16.mxu0 0
    %91 = vmatpush1.bf16.msra.mxu0 0
    %92 = vmatprep.subr.bf16.mxu0 0
    %93 = vmatpush1.bf16.msra.mxu0 0
    %94 = vmatprep.subr.bf16.mxu0 0
    %95 = vmatpush1.bf16.msra.mxu0 0
    %96 = vmatprep.subr.bf16.mxu0 0
    %97 = vmatpush1.bf16.msra.mxu0 0
    %98 = vmatprep.subr.bf16.mxu0 0
    %99 = vmatpush1.bf16.msra.mxu0 0
    %100 = vmatprep.subr.bf16.mxu0 0
    %101 = vmatpush1.bf16.msra.mxu0 0
    %102 = vmatprep.subr.bf16.mxu0 0
    %103 = vmatpush1.bf16.msra.mxu0 0
    %104 = vmatprep.subr.bf16.mxu0 0
    %105 = vmatpush1.bf16.msra.mxu0 %v88
    %106 = vmatprep.subr.bf16.mxu0 0
    %107 = vmatpush2.bf16.msra.mxu0 0
    %108 = vmatprep.subr.bf16.mxu0 0
    %109 = vmatpush2.bf16.msra.mxu0 0
    %110 = vmatprep.subr.bf16.mxu0 0
    %111 = vmatpush2.bf16.msra.mxu0 0
    %112 = vmatprep.subr.bf16.mxu0 0
    %113 = vmatpush2.bf16.msra.mxu0 0
    %114 = vmatprep.subr.bf16.mxu0 0
    %115 = vmatpush2.bf16.msra.mxu0 0
    %116 = vmatprep.subr.bf16.mxu0 0
    %117 = vmatpush2.bf16.msra.mxu0 0
    %118 = vmatprep.subr.bf16.mxu0 0
    %119 = vmatpush2.bf16.msra.mxu0 0
    %120 = vmatprep.subr.bf16.mxu0 0
    %121 = vmatpush2.bf16.msra.mxu0 0
    %122 = vmatprep.mubr.bf16.mxu0 0
    %123 = vmatmul.mubr.bf16.gmra.mxu0 %v84
    %v124 = vpop.f32.mrf.mxu0
    %v125 = vadd.f32 0.0, %v124
    %v126 = vpop.f32.mrf.mxu0
    %v127 = vpop.f32.mrf.mxu0
    %v128 = vpop.f32.mrf.mxu0
    %129 = vdwg.mxu0
    %v132 = vunpack.c.l.b16 %v77
    %v133 = vunpack.c.l.b16 %v78
    %v134 = vpack.c.b16 %v133, %v132
    %vm135 = vcmask 97280
    %v137 = vsel %vm135, %v76, 0
    %vm139 = vcmask 1045504
    %v141 = vsel %vm139, %v134, 0
    %143 = vmatprep.subr.bf16.mxu0 0
    %144 = vmatpush1.bf16.msra.mxu0 0
    %145 = vmatprep.subr.bf16.mxu0 0
    %146 = vmatpush1.bf16.msra.mxu0 0
    %147 = vmatprep.subr.bf16.mxu0 0
    %148 = vmatpush1.bf16.msra.mxu0 0
    %149 = vmatprep.subr.bf16.mxu0 0
    %150 = vmatpush1.bf16.msra.mxu0 0
    %151 = vmatprep.subr.bf16.mxu0 0
    %152 = vmatpush1.bf16.msra.mxu0 0
    %153 = vmatprep.subr.bf16.mxu0 0
    %154 = vmatpush1.bf16.msra.mxu0 0
    %155 = vmatprep.subr.bf16.mxu0 0
    %156 = vmatpush1.bf16.msra.mxu0 0
    %157 = vmatprep.subr.bf16.mxu0 0
    %158 = vmatpush1.bf16.msra.mxu0 %v141
    %159 = vmatprep.subr.bf16.mxu0 0
    %160 = vmatpush2.bf16.msra.mxu0 0
    %161 = vmatprep.subr.bf16.mxu0 0
    %162 = vmatpush2.bf16.msra.mxu0 0
    %163 = vmatprep.subr.bf16.mxu0 0
    %164 = vmatpush2.bf16.msra.mxu0 0
    %165 = vmatprep.subr.bf16.mxu0 0
    %166 = vmatpush2.bf16.msra.mxu0 0
    %167 = vmatprep.subr.bf16.mxu0 0
    %168 = vmatpush2.bf16.msra.mxu0 0
    %169 = vmatprep.subr.bf16.mxu0 0
    %170 = vmatpush2.bf16.msra.mxu0 0
    %171 = vmatprep.subr.bf16.mxu0 0
    %172 = vmatpush2.bf16.msra.mxu0 0
    %173 = vmatprep.subr.bf16.mxu0 0
    %174 = vmatpush2.bf16.msra.mxu0 0
    %175 = vmatprep.mubr.bf16.mxu0 0
    %176 = vmatmul.mubr.bf16.gmra.mxu0 %v137
    %v177 = vpop.f32.mrf.mxu0
    %v178 = vadd.f32 %v125, %v177
    %v179 = vpop.f32.mrf.mxu0
    %v180 = vpop.f32.mrf.mxu0
    %v181 = vpop.f32.mrf.mxu0
    %182 = vdwg.mxu0
    %v183 = vld [vmem:[%s4] sm:$0x1]
    %v185 = vlaneseq
    %v186 = vshrl.u32 %v185, 7
    %v187 = vsub.s32 0, %v186
    %v188 = vrot.slane %v183, %v187
    %v190 = vadd.f32 %v178, %v188
    %v191 = vmax.f32 %v190, 0.0
    %v192 = vpack.c.bf16 %v191, %v191
    %v193 = vld [vmem:[#allocation5] sm:$0xf]
    %v194 = vld [vmem:[#allocation5 + $0x4] sm:$0xf]
    %v195 = vld [vmem:[#allocation5 + $0x8] sm:$0xf]
    %v196 = vld [vmem:[#allocation5 + $0xc] sm:$0xf]
    %v197 = vld [vmem:[#allocation5 + $0x10] sm:$0xf]
    %v198 = vld [vmem:[#allocation5 + $0x14] sm:$0xf]
    %v199 = vld [vmem:[#allocation5 + $0x18] sm:$0xf]
    %v200 = vld [vmem:[#allocation5 + $0x1c] sm:$0xf]
    %v201 = vld [vmem:[#allocation5 + $0x20] sm:$0xf]
    %v202 = vld [vmem:[#allocation5 + $0x24] sm:$0xf]
    %v203 = vld [vmem:[#allocation5 + $0x28] sm:$0xf]
    %v204 = vld [vmem:[#allocation5 + $0x2c] sm:$0xf]
    %v205 = vld [vmem:[#allocation5 + $0x30] sm:$0xf]
    %v206 = vld [vmem:[#allocation5 + $0x34] sm:$0xf]
    %v207 = vld [vmem:[#allocation5 + $0x38] sm:$0xf]
    %v208 = vld [vmem:[#allocation5 + $0x3c] sm:$0xf]
    %v209 = vld [vmem:[%s6] sm:$0x1]
    %v211 = vlaneseq
    %v212 = vshrl.u32 %v211, 7
    %v213 = vsub.s32 0, %v212
    %v214 = vrot.slane %v209, %v213
    %v232 = vunpack.c.l.b16 %v193
    %v233 = vunpack.c.l.b16 %v194
    %v234 = vunpack.c.l.b16 %v195
    %v235 = vunpack.c.l.b16 %v196
    %v236 = vunpack.c.l.b16 %v197
    %v237 = vunpack.c.l.b16 %v198
    %v238 = vunpack.c.l.b16 %v199
    %v239 = vunpack.c.l.b16 %v200
    %v240 = vunpack.c.l.b16 %v201
    %v241 = vunpack.c.l.b16 %v202
    %v242 = vunpack.c.l.b16 %v203
    %v243 = vunpack.c.l.b16 %v204
    %v244 = vunpack.c.l.b16 %v205
    %v245 = vunpack.c.l.b16 %v206
    %v246 = vunpack.c.l.b16 %v207
    %v247 = vunpack.c.l.b16 %v208
    %v248 = vpack.c.b16 %v233, %v232
    %v249 = vpack.c.b16 %v235, %v234
    %v250 = vpack.c.b16 %v237, %v236
    %v251 = vpack.c.b16 %v239, %v238
    %v252 = vpack.c.b16 %v241, %v240
    %v253 = vpack.c.b16 %v243, %v242
    %v254 = vpack.c.b16 %v245, %v244
    %v255 = vpack.c.b16 %v247, %v246
    %264 = vmatprep.subr.bf16.mxu0 0
    %265 = vmatpush1.bf16.msra.mxu0 %v255
    %266 = vmatprep.subr.bf16.mxu0 0
    %267 = vmatpush1.bf16.msra.mxu0 %v254
    %268 = vmatprep.subr.bf16.mxu0 0
    %269 = vmatpush1.bf16.msra.mxu0 %v253
    %270 = vmatprep.subr.bf16.mxu0 0
    %271 = vmatpush1.bf16.msra.mxu0 %v252
    %272 = vmatprep.subr.bf16.mxu0 0
    %273 = vmatpush1.bf16.msra.mxu0 %v251
    %274 = vmatprep.subr.bf16.mxu0 0
    %275 = vmatpush1.bf16.msra.mxu0 %v250
    %276 = vmatprep.subr.bf16.mxu0 0
    %277 = vmatpush1.bf16.msra.mxu0 %v249
    %278 = vmatprep.subr.bf16.mxu0 0
    %279 = vmatpush1.bf16.msra.mxu0 %v248
    %280 = vmatprep.subr.bf16.mxu0 0
    %281 = vmatpush2.bf16.msra.mxu0 0
    %282 = vmatprep.subr.bf16.mxu0 0
    %283 = vmatpush2.bf16.msra.mxu0 0
    %284 = vmatprep.subr.bf16.mxu0 0
    %285 = vmatpush2.bf16.msra.mxu0 0
    %286 = vmatprep.subr.bf16.mxu0 0
    %287 = vmatpush2.bf16.msra.mxu0 0
    %288 = vmatprep.subr.bf16.mxu0 0
    %289 = vmatpush2.bf16.msra.mxu0 0
    %290 = vmatprep.subr.bf16.mxu0 0
    %291 = vmatpush2.bf16.msra.mxu0 0
    %292 = vmatprep.subr.bf16.mxu0 0
    %293 = vmatpush2.bf16.msra.mxu0 0
    %294 = vmatprep.subr.bf16.mxu0 0
    %295 = vmatpush2.bf16.msra.mxu0 0
    %296 = vmatprep.mubr.bf16.mxu0 0
    %297 = vmatmul.mubr.bf16.gmra.mxu0 %v192
    %v298 = vpop.f32.mrf.mxu0
    %v299 = vadd.f32 %v214, %v298
    %v300 = vpop.f32.mrf.mxu0
    %v301 = vpop.f32.mrf.mxu0
    %v302 = vpop.f32.mrf.mxu0
    %303 = vdwg.mxu0
    %v304 = vmax.f32 %v299, 0.0
    %v305 = vpack.c.bf16 %v304, %v304
    %v306 = vld [vmem:[#allocation7] sm:$0xf]
    %v307 = vld [vmem:[#allocation7 + $0x4] sm:$0xf]
    %v308 = vld [vmem:[#allocation7 + $0x8] sm:$0xf]
    %v309 = vld [vmem:[#allocation7 + $0xc] sm:$0xf]
    %v310 = vld [vmem:[#allocation7 + $0x10] sm:$0xf]
    %v311 = vld [vmem:[#allocation7 + $0x14] sm:$0xf]
    %v312 = vld [vmem:[#allocation7 + $0x18] sm:$0xf]
    %v313 = vld [vmem:[#allocation7 + $0x1c] sm:$0xf]
    %v314 = vld [vmem:[#allocation7 + $0x20] sm:$0xf]
    %v315 = vld [vmem:[#allocation7 + $0x24] sm:$0xf]
    %v316 = vld [vmem:[#allocation7 + $0x28] sm:$0xf]
    %v317 = vld [vmem:[#allocation7 + $0x2c] sm:$0xf]
    %v318 = vld [vmem:[#allocation7 + $0x30] sm:$0xf]
    %v319 = vld [vmem:[#allocation7 + $0x34] sm:$0xf]
    %v320 = vld [vmem:[#allocation7 + $0x38] sm:$0xf]
    %v321 = vld [vmem:[#allocation7 + $0x3c] sm:$0xf]
    %v322 = vld [vmem:[%s8] sm:$0x1]
    %v324 = vlaneseq
    %v325 = vshrl.u32 %v324, 7
    %v326 = vsub.s32 0, %v325
    %v327 = vrot.slane %v322, %v326
    %v345 = vunpack.c.l.b16 %v306
    %v346 = vunpack.c.l.b16 %v307
    %v347 = vunpack.c.l.b16 %v308
    %v348 = vunpack.c.l.b16 %v309
    %v349 = vunpack.c.l.b16 %v310
    %v350 = vunpack.c.l.b16 %v311
    %v351 = vunpack.c.l.b16 %v312
    %v352 = vunpack.c.l.b16 %v313
    %v353 = vunpack.c.l.b16 %v314
    %v354 = vunpack.c.l.b16 %v315
    %v355 = vunpack.c.l.b16 %v316
    %v356 = vunpack.c.l.b16 %v317
    %v357 = vunpack.c.l.b16 %v318
    %v358 = vunpack.c.l.b16 %v319
    %v359 = vunpack.c.l.b16 %v320
    %v360 = vunpack.c.l.b16 %v321
    %v361 = vpack.c.b16 %v346, %v345
    %v362 = vpack.c.b16 %v348, %v347
    %v363 = vpack.c.b16 %v350, %v349
    %v364 = vpack.c.b16 %v352, %v351
    %v365 = vpack.c.b16 %v354, %v353
    %v366 = vpack.c.b16 %v356, %v355
    %v367 = vpack.c.b16 %v358, %v357
    %v368 = vpack.c.b16 %v360, %v359
    %377 = vmatprep.subr.bf16.mxu0 0
    %378 = vmatpush1.bf16.msra.mxu0 %v368
    %379 = vmatprep.subr.bf16.mxu0 0
    %380 = vmatpush1.bf16.msra.mxu0 %v367
    %381 = vmatprep.subr.bf16.mxu0 0
    %382 = vmatpush1.bf16.msra.mxu0 %v366
    %383 = vmatprep.subr.bf16.mxu0 0
    %384 = vmatpush1.bf16.msra.mxu0 %v365
    %385 = vmatprep.subr.bf16.mxu0 0
    %386 = vmatpush1.bf16.msra.mxu0 %v364
    %387 = vmatprep.subr.bf16.mxu0 0
    %388 = vmatpush1.bf16.msra.mxu0 %v363
    %389 = vmatprep.subr.bf16.mxu0 0
    %390 = vmatpush1.bf16.msra.mxu0 %v362
    %391 = vmatprep.subr.bf16.mxu0 0
    %392 = vmatpush1.bf16.msra.mxu0 %v361
    %393 = vmatprep.subr.bf16.mxu0 0
    %394 = vmatpush2.bf16.msra.mxu0 0
    %395 = vmatprep.subr.bf16.mxu0 0
    %396 = vmatpush2.bf16.msra.mxu0 0
    %397 = vmatprep.subr.bf16.mxu0 0
    %398 = vmatpush2.bf16.msra.mxu0 0
    %399 = vmatprep.subr.bf16.mxu0 0
    %400 = vmatpush2.bf16.msra.mxu0 0
    %401 = vmatprep.subr.bf16.mxu0 0
    %402 = vmatpush2.bf16.msra.mxu0 0
    %403 = vmatprep.subr.bf16.mxu0 0
    %404 = vmatpush2.bf16.msra.mxu0 0
    %405 = vmatprep.subr.bf16.mxu0 0
    %406 = vmatpush2.bf16.msra.mxu0 0
    %407 = vmatprep.subr.bf16.mxu0 0
    %408 = vmatpush2.bf16.msra.mxu0 0
    %409 = vmatprep.mubr.bf16.mxu0 0
    %410 = vmatmul.mubr.bf16.gmra.mxu0 %v305
    %v411 = vpop.f32.mrf.mxu0
    %v412 = vadd.f32 %v327, %v411
    %v413 = vpop.f32.mrf.mxu0
    %v414 = vpop.f32.mrf.mxu0
    %v415 = vpop.f32.mrf.mxu0
    %416 = vdwg.mxu0
    %417 = vst [vmem:[#allocation8] sm:$0xff] %v412
    // Predicated region
    $region50: #{phi_forward.1} parent=1 // pred_check
      _
    $region51: #{phi_forward.1} parent=1 // pred_check_branch
      %419 = sbr.rel (0) target = $region53
    $region52: #{phi_forward.1} parent=1 // pred_region
      %s421 = ssub.s32 128, 128
      %422 = vsyncadd [#allocation4], %s421
      %s424 = sshll.u32 [#allocation8], 4
      %s425 = int_to_ptr.vmem [resolvable:$true] %s424
      %427 = dma.vmem_to_hbm [thread:$0]  %s425, 128, %s9, [#allocation4]
    $region53: #{phi_forward.1} parent=1 // pred_fallthru
      _
    // Predicated region
    $region54: #{phi_forward.1} parent=1 // pred_check
      _
    $region55: #{phi_forward.1} parent=1 // pred_check_branch
      %429 = sbr.rel (0) target = $region57
    $region56: #{phi_forward.1} parent=1 // pred_region
      %430 = dma.done [#allocation4], 128
    $region57: #{phi_forward.1} parent=1 // pred_fallthru
      _
    %431 = vsyncpa [#allocation3], 1
    %432 = vsyncpa [#allocation6], 1
    %433 = vsyncpa [#allocation4], 1

</llo_original>
